<compile_context>
chip_gen: v6e
topology: v6e:2x2x1
jax: 0.10.0
libtpu: 0.0.40
codegen_flags: <defaults>
</compile_context>

<pallas_src>
import functools

import jax
import jax.numpy as jnp
from jax.experimental import pallas as pl
from jax.experimental.pallas import tpu as pltpu


def _conv1x1_pad1_clamp_kernel(
    w_ref,   # SMEM (c_out * c_in,) f32 — flattened 1x1 conv weight, [co*c_in+ci]
    b_ref,   # SMEM (c_out,)        f32 — bias
    x_ref,   # VMEM (bn, c_in, h, w)       — input block, native dtype
    o_ref,   # VMEM (bn, c_out, h+2, w+2)  — padded + clamped output block
    *,
    c_in,
    c_out,
    h,
    w,
    min_value,
    max_value,
):
    bn = x_ref.shape[0]
    hp, wp = h + 2, w + 2
    out_dtype = o_ref.dtype

    # Load each input channel once, cast to f32 on the VPU, reuse for all
    # output channels (vectorized over the bn batch elements in the block).
    xs = [x_ref[:, ci, :, :].astype(jnp.float32) for ci in range(c_in)]

    for co in range(c_out):
        # Channel mix on the VPU: out[co] = sum_ci w[co, ci] * x[ci] + b[co].
        acc = w_ref[co * c_in] * xs[0]
        for ci in range(1, c_in):
            acc = acc + w_ref[co * c_in + ci] * xs[ci]
        acc = acc + b_ref[co]

        # Zero-padded border of a 1x1 conv is just the (clamped) bias.
        border = b_ref[co]

        # TODO(synk): torch.clamp_min/clamp_max with None raise in PyTorch;
        # here None is treated as a no-op bound.
        if min_value is not None:  # torch.clamp_min
            acc = jnp.maximum(acc, jnp.float32(min_value))
            border = jnp.maximum(border, jnp.float32(min_value))
        if max_value is not None:  # torch.clamp_max
            acc = jnp.minimum(acc, jnp.float32(max_value))
            border = jnp.minimum(border, jnp.float32(max_value))
        border = border.astype(out_dtype)

        # Each output element written exactly once:
        #   top / bottom padded rows (full wp-lane strips) ...
        o_ref[:, co, 0:1, :] = jnp.full((bn, 1, wp), border, out_dtype)
        o_ref[:, co, hp - 1 : hp, :] = jnp.full((bn, 1, wp), border, out_dtype)
        #   ... left / right padded columns of the interior rows ...
        o_ref[:, co, 1 : h + 1, 0:1] = jnp.full((bn, h, 1), border, out_dtype)
        o_ref[:, co, 1 : h + 1, wp - 1 : wp] = jnp.full((bn, h, 1), border, out_dtype)
        #   ... and the interior conv result (single store, no double write).
        o_ref[:, co, 1 : h + 1, 1 : w + 1] = acc.astype(out_dtype)


def _pick_batch_block(n, bytes_per_batch, target_bytes=8 << 20, min_steps=2):
    """Largest divisor of n such that one (input+output) block is roughly
    target_bytes and, if possible, the batch grid has >= min_steps steps
    (keeps both v7x TensorCores busy; v5e/v6e are single-TC)."""
    max_bn = max(1, min(n, target_bytes // max(bytes_per_batch, 1)))
    if n >= min_steps:
        max_bn = min(max_bn, max(1, n // min_steps))
    bn = 1
    for d in range(1, max_bn + 1):
        if n % d == 0:
            bn = d
    return bn


def conv1x1_pad1_clamp(x_nchw, weight, bias, min_value=None, max_value=None):
    """Conv2d(c_in->c_out, k=1, stride=1, padding=1) + clamp_min + clamp_max.

    x_nchw: (N, C_in, H, W); weight: (C_out, C_in, 1, 1) or (C_out, C_in);
    bias: (C_out,).  Returns (N, C_out, H+2, W+2) in x's dtype (NCHW).
    """
    n, c_in, h, w = x_nchw.shape
    c_out = weight.shape[0]
    hp, wp = h + 2, w + 2
    out_dtype = x_nchw.dtype

    # Tiny parameter reshapes only (c_out*c_in + c_out scalars) — no
    # tensor-sized wrapper glue (no pad / transpose / astype of x).
    w_flat = weight.reshape(c_out * c_in).astype(jnp.float32)
    b_flat = bias.reshape(c_out).astype(jnp.float32)

    in_bytes_per_b = c_in * h * w * x_nchw.dtype.itemsize
    out_bytes_per_b = c_out * hp * wp * jnp.dtype(out_dtype).itemsize
    bn = _pick_batch_block(n, in_bytes_per_b + out_bytes_per_b)

    kernel = functools.partial(
        _conv1x1_pad1_clamp_kernel,
        c_in=c_in,
        c_out=c_out,
        h=h,
        w=w,
        min_value=min_value,
        max_value=max_value,
    )

    cost = pl.CostEstimate(
        flops=2 * n * c_in * c_out * h * w,
        transcendentals=0,
        bytes_accessed=n * (in_bytes_per_b + out_bytes_per_b)
        + w_flat.size * 4
        + b_flat.size * 4,
    )

    return pl.pallas_call(
        kernel,
        out_shape=jax.ShapeDtypeStruct((n, c_out, hp, wp), out_dtype),
        grid=(n // bn,),
        in_specs=[
            # Weight / bias live in SMEM as scalars (no padded VMEM tiles).
            pl.BlockSpec(memory_space=pltpu.MemorySpace.SMEM),
            pl.BlockSpec(memory_space=pltpu.MemorySpace.SMEM),
            pl.BlockSpec((bn, c_in, h, w), lambda i: (i, 0, 0, 0)),
        ],
        out_specs=pl.BlockSpec((bn, c_out, hp, wp), lambda i: (i, 0, 0, 0)),
        compiler_params=pltpu.CompilerParams(
            # Batch axis is embarrassingly parallel -> sharded across v7x TCs.
            dimension_semantics=("parallel",),
            # ~8 MiB block pair, double-buffered: fits v7x 64 MiB VMEM with
            # headroom and is comfortably inside v5e/v6e's 128 MiB.
            vmem_limit_bytes=32 * 1024 * 1024,
        ),
        cost_estimate=cost,
    )(w_flat, b_flat, x_nchw)


if __name__ == "__main__":
    key = jax.random.PRNGKey(0)
    k_x, k_w, k_b = jax.random.split(key, 3)

    # Conv2d(3, 3, 1, 1, 1): weight (3, 3, 1, 1), bias (3,).
    N, C_IN, H, W = 2, 3, 6, 5
    C_OUT = 3
    x = jax.random.normal(k_x, (N, C_IN, H, W), dtype=jnp.float32)
    weight = jax.random.normal(k_w, (C_OUT, C_IN, 1, 1), dtype=jnp.float32) * 0.5
    bias = jax.random.normal(k_b, (C_OUT,), dtype=jnp.float32) * 0.1

    min_value, max_value = -0.5, 0.5

    out = conv1x1_pad1_clamp(x, weight, bias, min_value, max_value)
    out = jax.block_until_ready(out)

    # Plain-JAX reference (same math as the PyTorch module).
    x_pad = jnp.pad(x, ((0, 0), (0, 0), (1, 1), (1, 1)))
    w2d = weight.reshape(C_OUT, C_IN)
    ref = jnp.einsum("oc,nchw->nohw", w2d, x_pad) + bias[None, :, None, None]
    ref = jnp.clip(ref, min_value, max_value)

    assert out.shape == (N, C_OUT, H + 2, W + 2), out.shape
    assert jnp.allclose(out, ref, atol=1e-5), float(jnp.max(jnp.abs(out - ref)))

    print("KERNEL_OK")
</pallas_src>

<mosaic_0001>
module attributes {stable_mosaic.version = 11 : i64} {
  func.func @_conv1x1_pad1_clamp_kernel(%arg0: i32, %arg1: memref<9xf32, #tpu.memory_space<smem>>, %arg2: memref<3xf32, #tpu.memory_space<smem>>, %arg3: memref<1x3x6x5xf32, #tpu.memory_space<vmem>>, %arg4: memref<1x3x8x7xf32, #tpu.memory_space<vmem>>) attributes {dimension_semantics = [#tpu.dimension_semantics<parallel>], iteration_bounds = array<i64: 2>, scalar_prefetch = 0 : i64, scratch_operands = 0 : i64, tpu.core_type = #tpu.core_type<tc>, window_params = [{transform_indices = @transform_0, window_bounds = array<i64: 9>}, {transform_indices = @transform_1, window_bounds = array<i64: 3>}, {transform_indices = @transform_2, window_bounds = array<i64: 1, 3, 6, 5>}, {transform_indices = @transform_3, window_bounds = array<i64: 1, 3, 8, 7>}]} {
    %c0 = arith.constant 0 : index
    %c0_0 = arith.constant 0 : index
    %c0_1 = arith.constant 0 : index
    %c0_2 = arith.constant 0 : index
    %0 = vector.load %arg3[%c0, %c0_0, %c0_1, %c0_2] : memref<1x3x6x5xf32, #tpu.memory_space<vmem>>, vector<1x1x6x5xf32>
    %1 = vector.shape_cast %0 : vector<1x1x6x5xf32> to vector<1x6x5xf32>
    %c0_3 = arith.constant 0 : index
    %c1 = arith.constant 1 : index
    %c0_4 = arith.constant 0 : index
    %c0_5 = arith.constant 0 : index
    %2 = vector.load %arg3[%c0_3, %c1, %c0_4, %c0_5] : memref<1x3x6x5xf32, #tpu.memory_space<vmem>>, vector<1x1x6x5xf32>
    %3 = vector.shape_cast %2 : vector<1x1x6x5xf32> to vector<1x6x5xf32>
    %c0_6 = arith.constant 0 : index
    %c2 = arith.constant 2 : index
    %c0_7 = arith.constant 0 : index
    %c0_8 = arith.constant 0 : index
    %4 = vector.load %arg3[%c0_6, %c2, %c0_7, %c0_8] : memref<1x3x6x5xf32, #tpu.memory_space<vmem>>, vector<1x1x6x5xf32>
    %5 = vector.shape_cast %4 : vector<1x1x6x5xf32> to vector<1x6x5xf32>
    %c0_9 = arith.constant 0 : index
    %6 = memref.load %arg1[%c0_9] : memref<9xf32, #tpu.memory_space<smem>>
    %7 = vector.broadcast %6 : f32 to vector<1x6x5xf32>
    %8 = arith.mulf %7, %1 : vector<1x6x5xf32>
    %c1_10 = arith.constant 1 : index
    %9 = memref.load %arg1[%c1_10] : memref<9xf32, #tpu.memory_space<smem>>
    %10 = vector.broadcast %9 : f32 to vector<1x6x5xf32>
    %11 = arith.mulf %10, %3 : vector<1x6x5xf32>
    %12 = arith.addf %8, %11 : vector<1x6x5xf32>
    %c2_11 = arith.constant 2 : index
    %13 = memref.load %arg1[%c2_11] : memref<9xf32, #tpu.memory_space<smem>>
    %14 = vector.broadcast %13 : f32 to vector<1x6x5xf32>
    %15 = arith.mulf %14, %5 : vector<1x6x5xf32>
    %16 = arith.addf %12, %15 : vector<1x6x5xf32>
    %c0_12 = arith.constant 0 : index
    %17 = memref.load %arg2[%c0_12] : memref<3xf32, #tpu.memory_space<smem>>
    %18 = vector.broadcast %17 : f32 to vector<1x6x5xf32>
    %19 = arith.addf %16, %18 : vector<1x6x5xf32>
    %c0_13 = arith.constant 0 : index
    %20 = memref.load %arg2[%c0_13] : memref<3xf32, #tpu.memory_space<smem>>
    %cst = arith.constant -5.000000e-01 : f32
    %21 = vector.broadcast %cst : f32 to vector<1x6x5xf32>
    %22 = arith.maximumf %19, %21 : vector<1x6x5xf32>
    %cst_14 = arith.constant -5.000000e-01 : f32
    %23 = arith.maximumf %20, %cst_14 : f32
    %cst_15 = arith.constant 5.000000e-01 : f32
    %24 = vector.broadcast %cst_15 : f32 to vector<1x6x5xf32>
    %25 = arith.minimumf %22, %24 : vector<1x6x5xf32>
    %cst_16 = arith.constant 5.000000e-01 : f32
    %26 = arith.minimumf %23, %cst_16 : f32
    %27 = vector.broadcast %26 : f32 to vector<1x1x7xf32>
    %c0_17 = arith.constant 0 : index
    %c0_18 = arith.constant 0 : index
    %c0_19 = arith.constant 0 : index
    %c0_20 = arith.constant 0 : index
    %28 = vector.load %arg4[%c0_17, %c0_18, %c0_19, %c0_20] : memref<1x3x8x7xf32, #tpu.memory_space<vmem>>, vector<1x1x1x7xf32>
    %29 = vector.shape_cast %28 : vector<1x1x1x7xf32> to vector<1x1x7xf32>
    %30 = vector.shape_cast %27 : vector<1x1x7xf32> to vector<1x1x1x7xf32>
    tpu.vector_store %arg4[%c0_17, %c0_18, %c0_19, %c0_20], %30 {strides = array<i32>} : memref<1x3x8x7xf32, #tpu.memory_space<vmem>>, vector<1x1x1x7xf32>,
    %31 = vector.broadcast %26 : f32 to vector<1x1x7xf32>
    %c0_21 = arith.constant 0 : index
    %c0_22 = arith.constant 0 : index
    %c7 = arith.constant 7 : index
    %c0_23 = arith.constant 0 : index
    %32 = vector.load %arg4[%c0_21, %c0_22, %c7, %c0_23] : memref<1x3x8x7xf32, #tpu.memory_space<vmem>>, vector<1x1x1x7xf32>
    %33 = vector.shape_cast %32 : vector<1x1x1x7xf32> to vector<1x1x7xf32>
    %34 = vector.shape_cast %31 : vector<1x1x7xf32> to vector<1x1x1x7xf32>
    tpu.vector_store %arg4[%c0_21, %c0_22, %c7, %c0_23], %34 {strides = array<i32>} : memref<1x3x8x7xf32, #tpu.memory_space<vmem>>, vector<1x1x1x7xf32>,
    %35 = vector.broadcast %26 : f32 to vector<1x6x1xf32>
    %c0_24 = arith.constant 0 : index
    %c0_25 = arith.constant 0 : index
    %c1_26 = arith.constant 1 : index
    %c0_27 = arith.constant 0 : index
    %36 = vector.load %arg4[%c0_24, %c0_25, %c1_26, %c0_27] : memref<1x3x8x7xf32, #tpu.memory_space<vmem>>, vector<1x1x6x1xf32>
    %37 = vector.shape_cast %36 : vector<1x1x6x1xf32> to vector<1x6x1xf32>
    %38 = vector.shape_cast %35 : vector<1x6x1xf32> to vector<1x1x6x1xf32>
    tpu.vector_store %arg4[%c0_24, %c0_25, %c1_26, %c0_27], %38 {strides = array<i32>} : memref<1x3x8x7xf32, #tpu.memory_space<vmem>>, vector<1x1x6x1xf32>,
    %39 = vector.broadcast %26 : f32 to vector<1x6x1xf32>
    %c0_28 = arith.constant 0 : index
    %c0_29 = arith.constant 0 : index
    %c1_30 = arith.constant 1 : index
    %c6 = arith.constant 6 : index
    %40 = vector.load %arg4[%c0_28, %c0_29, %c1_30, %c6] : memref<1x3x8x7xf32, #tpu.memory_space<vmem>>, vector<1x1x6x1xf32>
    %41 = vector.shape_cast %40 : vector<1x1x6x1xf32> to vector<1x6x1xf32>
    %42 = vector.shape_cast %39 : vector<1x6x1xf32> to vector<1x1x6x1xf32>
    tpu.vector_store %arg4[%c0_28, %c0_29, %c1_30, %c6], %42 {strides = array<i32>} : memref<1x3x8x7xf32, #tpu.memory_space<vmem>>, vector<1x1x6x1xf32>,
    %c0_31 = arith.constant 0 : index
    %c0_32 = arith.constant 0 : index
    %c1_33 = arith.constant 1 : index
    %c1_34 = arith.constant 1 : index
    %43 = vector.load %arg4[%c0_31, %c0_32, %c1_33, %c1_34] : memref<1x3x8x7xf32, #tpu.memory_space<vmem>>, vector<1x1x6x5xf32>
    %44 = vector.shape_cast %43 : vector<1x1x6x5xf32> to vector<1x6x5xf32>
    %45 = vector.shape_cast %25 : vector<1x6x5xf32> to vector<1x1x6x5xf32>
    tpu.vector_store %arg4[%c0_31, %c0_32, %c1_33, %c1_34], %45 {strides = array<i32>} : memref<1x3x8x7xf32, #tpu.memory_space<vmem>>, vector<1x1x6x5xf32>,
    %c3 = arith.constant 3 : index
    %46 = memref.load %arg1[%c3] : memref<9xf32, #tpu.memory_space<smem>>
    %47 = vector.broadcast %46 : f32 to vector<1x6x5xf32>
    %48 = arith.mulf %47, %1 : vector<1x6x5xf32>
    %c4 = arith.constant 4 : index
    %49 = memref.load %arg1[%c4] : memref<9xf32, #tpu.memory_space<smem>>
    %50 = vector.broadcast %49 : f32 to vector<1x6x5xf32>
    %51 = arith.mulf %50, %3 : vector<1x6x5xf32>
    %52 = arith.addf %48, %51 : vector<1x6x5xf32>
    %c5 = arith.constant 5 : index
    %53 = memref.load %arg1[%c5] : memref<9xf32, #tpu.memory_space<smem>>
    %54 = vector.broadcast %53 : f32 to vector<1x6x5xf32>
    %55 = arith.mulf %54, %5 : vector<1x6x5xf32>
    %56 = arith.addf %52, %55 : vector<1x6x5xf32>
    %c1_35 = arith.constant 1 : index
    %57 = memref.load %arg2[%c1_35] : memref<3xf32, #tpu.memory_space<smem>>
    %58 = vector.broadcast %57 : f32 to vector<1x6x5xf32>
    %59 = arith.addf %56, %58 : vector<1x6x5xf32>
    %c1_36 = arith.constant 1 : index
    %60 = memref.load %arg2[%c1_36] : memref<3xf32, #tpu.memory_space<smem>>
    %cst_37 = arith.constant -5.000000e-01 : f32
    %61 = vector.broadcast %cst_37 : f32 to vector<1x6x5xf32>
    %62 = arith.maximumf %59, %61 : vector<1x6x5xf32>
    %cst_38 = arith.constant -5.000000e-01 : f32
    %63 = arith.maximumf %60, %cst_38 : f32
    %cst_39 = arith.constant 5.000000e-01 : f32
    %64 = vector.broadcast %cst_39 : f32 to vector<1x6x5xf32>
    %65 = arith.minimumf %62, %64 : vector<1x6x5xf32>
    %cst_40 = arith.constant 5.000000e-01 : f32
    %66 = arith.minimumf %63, %cst_40 : f32
    %67 = vector.broadcast %66 : f32 to vector<1x1x7xf32>
    %c0_41 = arith.constant 0 : index
    %c1_42 = arith.constant 1 : index
    %c0_43 = arith.constant 0 : index
    %c0_44 = arith.constant 0 : index
    %68 = vector.load %arg4[%c0_41, %c1_42, %c0_43, %c0_44] : memref<1x3x8x7xf32, #tpu.memory_space<vmem>>, vector<1x1x1x7xf32>
    %69 = vector.shape_cast %68 : vector<1x1x1x7xf32> to vector<1x1x7xf32>
    %70 = vector.shape_cast %67 : vector<1x1x7xf32> to vector<1x1x1x7xf32>
    tpu.vector_store %arg4[%c0_41, %c1_42, %c0_43, %c0_44], %70 {strides = array<i32>} : memref<1x3x8x7xf32, #tpu.memory_space<vmem>>, vector<1x1x1x7xf32>,
    %71 = vector.broadcast %66 : f32 to vector<1x1x7xf32>
    %c0_45 = arith.constant 0 : index
    %c1_46 = arith.constant 1 : index
    %c7_47 = arith.constant 7 : index
    %c0_48 = arith.constant 0 : index
    %72 = vector.load %arg4[%c0_45, %c1_46, %c7_47, %c0_48] : memref<1x3x8x7xf32, #tpu.memory_space<vmem>>, vector<1x1x1x7xf32>
    %73 = vector.shape_cast %72 : vector<1x1x1x7xf32> to vector<1x1x7xf32>
    %74 = vector.shape_cast %71 : vector<1x1x7xf32> to vector<1x1x1x7xf32>
    tpu.vector_store %arg4[%c0_45, %c1_46, %c7_47, %c0_48], %74 {strides = array<i32>} : memref<1x3x8x7xf32, #tpu.memory_space<vmem>>, vector<1x1x1x7xf32>,
    %75 = vector.broadcast %66 : f32 to vector<1x6x1xf32>
    %c0_49 = arith.constant 0 : index
    %c1_50 = arith.constant 1 : index
    %c1_51 = arith.constant 1 : index
    %c0_52 = arith.constant 0 : index
    %76 = vector.load %arg4[%c0_49, %c1_50, %c1_51, %c0_52] : memref<1x3x8x7xf32, #tpu.memory_space<vmem>>, vector<1x1x6x1xf32>
    %77 = vector.shape_cast %76 : vector<1x1x6x1xf32> to vector<1x6x1xf32>
    %78 = vector.shape_cast %75 : vector<1x6x1xf32> to vector<1x1x6x1xf32>
    tpu.vector_store %arg4[%c0_49, %c1_50, %c1_51, %c0_52], %78 {strides = array<i32>} : memref<1x3x8x7xf32, #tpu.memory_space<vmem>>, vector<1x1x6x1xf32>,
    %79 = vector.broadcast %66 : f32 to vector<1x6x1xf32>
    %c0_53 = arith.constant 0 : index
    %c1_54 = arith.constant 1 : index
    %c1_55 = arith.constant 1 : index
    %c6_56 = arith.constant 6 : index
    %80 = vector.load %arg4[%c0_53, %c1_54, %c1_55, %c6_56] : memref<1x3x8x7xf32, #tpu.memory_space<vmem>>, vector<1x1x6x1xf32>
    %81 = vector.shape_cast %80 : vector<1x1x6x1xf32> to vector<1x6x1xf32>
    %82 = vector.shape_cast %79 : vector<1x6x1xf32> to vector<1x1x6x1xf32>
    tpu.vector_store %arg4[%c0_53, %c1_54, %c1_55, %c6_56], %82 {strides = array<i32>} : memref<1x3x8x7xf32, #tpu.memory_space<vmem>>, vector<1x1x6x1xf32>,
    %c0_57 = arith.constant 0 : index
    %c1_58 = arith.constant 1 : index
    %c1_59 = arith.constant 1 : index
    %c1_60 = arith.constant 1 : index
    %83 = vector.load %arg4[%c0_57, %c1_58, %c1_59, %c1_60] : memref<1x3x8x7xf32, #tpu.memory_space<vmem>>, vector<1x1x6x5xf32>
    %84 = vector.shape_cast %83 : vector<1x1x6x5xf32> to vector<1x6x5xf32>
    %85 = vector.shape_cast %65 : vector<1x6x5xf32> to vector<1x1x6x5xf32>
    tpu.vector_store %arg4[%c0_57, %c1_58, %c1_59, %c1_60], %85 {strides = array<i32>} : memref<1x3x8x7xf32, #tpu.memory_space<vmem>>, vector<1x1x6x5xf32>,
    %c6_61 = arith.constant 6 : index
    %86 = memref.load %arg1[%c6_61] : memref<9xf32, #tpu.memory_space<smem>>
    %87 = vector.broadcast %86 : f32 to vector<1x6x5xf32>
    %88 = arith.mulf %87, %1 : vector<1x6x5xf32>
    %c7_62 = arith.constant 7 : index
    %89 = memref.load %arg1[%c7_62] : memref<9xf32, #tpu.memory_space<smem>>
    %90 = vector.broadcast %89 : f32 to vector<1x6x5xf32>
    %91 = arith.mulf %90, %3 : vector<1x6x5xf32>
    %92 = arith.addf %88, %91 : vector<1x6x5xf32>
    %c8 = arith.constant 8 : index
    %93 = memref.load %arg1[%c8] : memref<9xf32, #tpu.memory_space<smem>>
    %94 = vector.broadcast %93 : f32 to vector<1x6x5xf32>
    %95 = arith.mulf %94, %5 : vector<1x6x5xf32>
    %96 = arith.addf %92, %95 : vector<1x6x5xf32>
    %c2_63 = arith.constant 2 : index
    %97 = memref.load %arg2[%c2_63] : memref<3xf32, #tpu.memory_space<smem>>
    %98 = vector.broadcast %97 : f32 to vector<1x6x5xf32>
    %99 = arith.addf %96, %98 : vector<1x6x5xf32>
    %c2_64 = arith.constant 2 : index
    %100 = memref.load %arg2[%c2_64] : memref<3xf32, #tpu.memory_space<smem>>
    %cst_65 = arith.constant -5.000000e-01 : f32
    %101 = vector.broadcast %cst_65 : f32 to vector<1x6x5xf32>
    %102 = arith.maximumf %99, %101 : vector<1x6x5xf32>
    %cst_66 = arith.constant -5.000000e-01 : f32
    %103 = arith.maximumf %100, %cst_66 : f32
    %cst_67 = arith.constant 5.000000e-01 : f32
    %104 = vector.broadcast %cst_67 : f32 to vector<1x6x5xf32>
    %105 = arith.minimumf %102, %104 : vector<1x6x5xf32>
    %cst_68 = arith.constant 5.000000e-01 : f32
    %106 = arith.minimumf %103, %cst_68 : f32
    %107 = vector.broadcast %106 : f32 to vector<1x1x7xf32>
    %c0_69 = arith.constant 0 : index
    %c2_70 = arith.constant 2 : index
    %c0_71 = arith.constant 0 : index
    %c0_72 = arith.constant 0 : index
    %108 = vector.load %arg4[%c0_69, %c2_70, %c0_71, %c0_72] : memref<1x3x8x7xf32, #tpu.memory_space<vmem>>, vector<1x1x1x7xf32>
    %109 = vector.shape_cast %108 : vector<1x1x1x7xf32> to vector<1x1x7xf32>
    %110 = vector.shape_cast %107 : vector<1x1x7xf32> to vector<1x1x1x7xf32>
    tpu.vector_store %arg4[%c0_69, %c2_70, %c0_71, %c0_72], %110 {strides = array<i32>} : memref<1x3x8x7xf32, #tpu.memory_space<vmem>>, vector<1x1x1x7xf32>,
    %111 = vector.broadcast %106 : f32 to vector<1x1x7xf32>
    %c0_73 = arith.constant 0 : index
    %c2_74 = arith.constant 2 : index
    %c7_75 = arith.constant 7 : index
    %c0_76 = arith.constant 0 : index
    %112 = vector.load %arg4[%c0_73, %c2_74, %c7_75, %c0_76] : memref<1x3x8x7xf32, #tpu.memory_space<vmem>>, vector<1x1x1x7xf32>
    %113 = vector.shape_cast %112 : vector<1x1x1x7xf32> to vector<1x1x7xf32>
    %114 = vector.shape_cast %111 : vector<1x1x7xf32> to vector<1x1x1x7xf32>
    tpu.vector_store %arg4[%c0_73, %c2_74, %c7_75, %c0_76], %114 {strides = array<i32>} : memref<1x3x8x7xf32, #tpu.memory_space<vmem>>, vector<1x1x1x7xf32>,
    %115 = vector.broadcast %106 : f32 to vector<1x6x1xf32>
    %c0_77 = arith.constant 0 : index
    %c2_78 = arith.constant 2 : index
    %c1_79 = arith.constant 1 : index
    %c0_80 = arith.constant 0 : index
    %116 = vector.load %arg4[%c0_77, %c2_78, %c1_79, %c0_80] : memref<1x3x8x7xf32, #tpu.memory_space<vmem>>, vector<1x1x6x1xf32>
    %117 = vector.shape_cast %116 : vector<1x1x6x1xf32> to vector<1x6x1xf32>
    %118 = vector.shape_cast %115 : vector<1x6x1xf32> to vector<1x1x6x1xf32>
    tpu.vector_store %arg4[%c0_77, %c2_78, %c1_79, %c0_80], %118 {strides = array<i32>} : memref<1x3x8x7xf32, #tpu.memory_space<vmem>>, vector<1x1x6x1xf32>,
    %119 = vector.broadcast %106 : f32 to vector<1x6x1xf32>
    %c0_81 = arith.constant 0 : index
    %c2_82 = arith.constant 2 : index
    %c1_83 = arith.constant 1 : index
    %c6_84 = arith.constant 6 : index
    %120 = vector.load %arg4[%c0_81, %c2_82, %c1_83, %c6_84] : memref<1x3x8x7xf32, #tpu.memory_space<vmem>>, vector<1x1x6x1xf32>
    %121 = vector.shape_cast %120 : vector<1x1x6x1xf32> to vector<1x6x1xf32>
    %122 = vector.shape_cast %119 : vector<1x6x1xf32> to vector<1x1x6x1xf32>
    tpu.vector_store %arg4[%c0_81, %c2_82, %c1_83, %c6_84], %122 {strides = array<i32>} : memref<1x3x8x7xf32, #tpu.memory_space<vmem>>, vector<1x1x6x1xf32>,
    %c0_85 = arith.constant 0 : index
    %c2_86 = arith.constant 2 : index
    %c1_87 = arith.constant 1 : index
    %c1_88 = arith.constant 1 : index
    %123 = vector.load %arg4[%c0_85, %c2_86, %c1_87, %c1_88] : memref<1x3x8x7xf32, #tpu.memory_space<vmem>>, vector<1x1x6x5xf32>
    %124 = vector.shape_cast %123 : vector<1x1x6x5xf32> to vector<1x6x5xf32>
    %125 = vector.shape_cast %105 : vector<1x6x5xf32> to vector<1x1x6x5xf32>
    tpu.vector_store %arg4[%c0_85, %c2_86, %c1_87, %c1_88], %125 {strides = array<i32>} : memref<1x3x8x7xf32, #tpu.memory_space<vmem>>, vector<1x1x6x5xf32>,
    return
  }
  func.func @transform_0(%arg0: i32) -> i32 {
    %c0_i32 = arith.constant 0 : i32
    %c0_i32_0 = arith.constant 0 : i32
    return %c0_i32 : i32
  }
  func.func @transform_1(%arg0: i32) -> i32 {
    %c0_i32 = arith.constant 0 : i32
    %c0_i32_0 = arith.constant 0 : i32
    return %c0_i32 : i32
  }
  func.func @transform_2(%arg0: i32) -> (i32, i32, i32, i32) {
    %c0_i32 = arith.constant 0 : i32
    %c0_i32_0 = arith.constant 0 : i32
    %c0_i32_1 = arith.constant 0 : i32
    %c0_i32_2 = arith.constant 0 : i32
    return %arg0, %c0_i32, %c0_i32_0, %c0_i32_1 : i32, i32, i32, i32
  }
  func.func @transform_3(%arg0: i32) -> (i32, i32, i32, i32) {
    %c0_i32 = arith.constant 0 : i32
    %c0_i32_0 = arith.constant 0 : i32
    %c0_i32_1 = arith.constant 0 : i32
    %c0_i32_2 = arith.constant 0 : i32
    return %arg0, %c0_i32, %c0_i32_0, %c0_i32_1 : i32, i32, i32, i32
  }
}

</mosaic_0001>

<llo_original>
// kernel: tpu_custom_call.1
$region0: #{tpu_custom_call.1}
  #allocation0 [shape = 'u32[]', space=smem, size = 0x4, offset = 0x4, fixed_abs, tag = 'smem constant byte address 0x4 - core index']
  #allocation1 [shape = 'u32[144,128]{1,0:T(1,128)}', space=vmem, size = 0x12000, scoped, tag = 'internal scratch']
  %s0 = inlined_call_operand.vmem [shape: f32[9], index: 0, kind: input, shape index: {}]
  %s1 = inlined_call_operand.vmem [shape: f32[3], index: 1, kind: input, shape index: {}]
  %s2 = inlined_call_operand.vmem [shape: f32[2,3,6,5], index: 2, kind: input, shape index: {}]
  %s3 = inlined_call_operand.vmem [shape: f32[2,3,8,7], index: 3, kind: output, shape index: {}]
  %s4 = sld [smem:[#allocation0]]
  $region53: #{tpu_custom_call.1} parent=0
    _
  %s6 = ssub.s32 1, %s4
  %s7 = scalar_select 0, %s6, %s4
  $region1: #{tpu_custom_call.1} parent=0
    #allocation2 [shape = 'u8[512]{0}', space=smem, size = 0x200, scoped, tag = 'input window, operand 0, single buffered']
    #allocation3 [shape = 's32[2]{0}', space=sflag, size = 0x8, scoped, tag = 'scoped memory for tpu_custom_call.1']
    #allocation4 [shape = 'u8[512]{0}', space=smem, size = 0x200, scoped, tag = 'input window, operand 1, single buffered']
    #allocation5 [shape = 's32[1]{0}', space=sflag, size = 0x4, scoped, tag = 'scoped memory for tpu_custom_call.1']
    %8 = vsyncpa [#allocation3], 0
    %9 = vsyncpa [#allocation5], 0
    loop: start=0, step=1, limit=4
    $region2: #{tpu_custom_call.1} parent=1 // loop_pre_header
      _
    $region3: #{tpu_custom_call.1} parent=1 // loop_header
      %s11 = sphi 0, %s15
      %p12 = scmp.ge.s32.totalorder %s11, 4
      %s19 = sphi 0, %s19
      %s21 = sphi 0, %s19
      %s22 = sphi 0, %s21
      %s36 = sphi 0, %s22
      %s40 = sphi 0, %s40
      %s42 = sphi 0, %s40
      %s43 = sphi 0, %s42
      %s57 = sphi 0, %s43
      %s63 = sphi 0, %s65
      %s66 = sphi 0, %s63
      %s67 = sphi 0, %s66
      %s83 = sphi 0, %s67
      %s89 = sphi 0, %s91
      %s92 = sphi 0, %s89
      %s93 = sphi 0, %s92
      %s109 = sphi 0, %s93
    $region4: #{tpu_custom_call.1} parent=1 // loop_header_branch
      %14 = sbr.rel (%p12) target = $region8
    $region5: #{tpu_custom_call.1} parent=1 // loop_body
      %s16 = ssub.s32 %s11, 1
      %s17 = ssub.s32 %s11, 2
      %s18 = sadd.s32 %s11, 1
      %s20 = sadd.s32 %s19, 1
      %p23 = scmp.eq.s32.totalorder %s11, 1
      %p24 = scmp.ne.s32.totalorder %s19, %s21
      %p25 = scmp.eq.s32.totalorder %s11, 0
      %p26 = por %p24, %p25
      %p27 = scmp.ne.s32.totalorder %s19, %s21
      %p28 = scmp.eq.s32.totalorder %s16, 1
      %p29 = por %p27, %p28
      %p30 = scmp.ne.s32.totalorder %s21, %s22
      %p31 = scmp.eq.s32.totalorder %s16, 0
      %p32 = por %p30, %p31
      %p33 = scmp.ne.s32.totalorder %s21, %s22
      %p34 = scmp.eq.s32.totalorder %s17, 1
      %p35 = por %p33, %p34
      %p37 = scmp.ne.s32.totalorder %s22, %s36
      %p38 = scmp.eq.s32.totalorder %s17, 0
      %p39 = por %p37, %p38
      %s41 = sadd.s32 %s40, 1
      %p44 = scmp.eq.s32.totalorder %s11, 1
      %p45 = scmp.ne.s32.totalorder %s40, %s42
      %p46 = scmp.eq.s32.totalorder %s11, 0
      %p47 = por %p45, %p46
      %p48 = scmp.ne.s32.totalorder %s40, %s42
      %p49 = scmp.eq.s32.totalorder %s16, 1
      %p50 = por %p48, %p49
      %p51 = scmp.ne.s32.totalorder %s42, %s43
      %p52 = scmp.eq.s32.totalorder %s16, 0
      %p53 = por %p51, %p52
      %p54 = scmp.ne.s32.totalorder %s42, %s43
      %p55 = scmp.eq.s32.totalorder %s17, 1
      %p56 = por %p54, %p55
      %p58 = scmp.ne.s32.totalorder %s43, %s57
      %p59 = scmp.eq.s32.totalorder %s17, 0
      %p60 = por %p58, %p59
      %s61 = ssub.s32 %s11, %s18
      %p62 = scmp.eq.s32.totalorder %s61, 0
      %s64 = sadd.s32 %s63, 1
      %s65 = scalar_select %p62, %s63, %s64
      %p68 = pneg %p62
      %p69 = scmp.eq.s32.totalorder %s11, 1
      %p70 = por %p68, %p69
      %p71 = scmp.ne.s32.totalorder %s63, %s66
      %p72 = scmp.eq.s32.totalorder %s11, 0
      %p73 = por %p71, %p72
      %p74 = scmp.ne.s32.totalorder %s63, %s66
      %p75 = scmp.eq.s32.totalorder %s16, 1
      %p76 = por %p74, %p75
      %p77 = scmp.ne.s32.totalorder %s66, %s67
      %p78 = scmp.eq.s32.totalorder %s16, 0
      %p79 = por %p77, %p78
      %p80 = scmp.ne.s32.totalorder %s66, %s67
      %p81 = scmp.eq.s32.totalorder %s17, 1
      %p82 = por %p80, %p81
      %p84 = scmp.ne.s32.totalorder %s67, %s83
      %p85 = scmp.eq.s32.totalorder %s17, 0
      %p86 = por %p84, %p85
      %s87 = ssub.s32 %s11, %s18
      %p88 = scmp.eq.s32.totalorder %s87, 0
      %s90 = sadd.s32 %s89, 1
      %s91 = scalar_select %p88, %s89, %s90
      %p94 = pneg %p88
      %p95 = scmp.eq.s32.totalorder %s11, 1
      %p96 = por %p94, %p95
      %p97 = scmp.ne.s32.totalorder %s89, %s92
      %p98 = scmp.eq.s32.totalorder %s11, 0
      %p99 = por %p97, %p98
      %p100 = scmp.ne.s32.totalorder %s89, %s92
      %p101 = scmp.eq.s32.totalorder %s16, 1
      %p102 = por %p100, %p101
      %p103 = scmp.ne.s32.totalorder %s92, %s93
      %p104 = scmp.eq.s32.totalorder %s16, 0
      %p105 = por %p103, %p104
      %p106 = scmp.ne.s32.totalorder %s92, %s93
      %p107 = scmp.eq.s32.totalorder %s17, 1
      %p108 = por %p106, %p107
      %p110 = scmp.ne.s32.totalorder %s93, %s109
      %p111 = scmp.eq.s32.totalorder %s17, 0
      %p112 = por %p110, %p111
      %p113 = scmp.le.s32.totalorder 1, %s11
      %p114 = scmp.lt.s32.totalorder %s11, 3
      %p115 = pnand %p113, %p114
      %p116 = pneg %p115
      // Predicated region
      $region9: #{tpu_custom_call.1} parent=5 // pred_check
        _
      $region10: #{tpu_custom_call.1} parent=5 // pred_check_branch
        %118 = sbr.rel (%p115) target = $region12
      $region11: #{tpu_custom_call.1} parent=5 // pred_region
        %s119 = ssub.s32 %s11, 1
        // Predicated region
        $region13: #{tpu_custom_call.1} parent=11 // pred_check
          %p120 = pneg %p32
        $region14: #{tpu_custom_call.1} parent=11 // pred_check_branch
          %122 = sbr.rel (%p120) target = $region16
        $region15: #{tpu_custom_call.1} parent=11 // pred_region
          %s124 = ssub.s32 16, 16
          %125 = vsyncadd [#allocation3], %s124
          %s127 = sshll.u32 %s0, 4
          %s128 = int_to_ptr.vmem [resolvable:$true] %s127
          %130 = dma.vmem_to_smem %s128, 16, [#allocation2], [#allocation3]
        $region16: #{tpu_custom_call.1} parent=11 // pred_fallthru
          _
        // Predicated region
        $region17: #{tpu_custom_call.1} parent=11 // pred_check
          %p131 = pneg %p53
        $region18: #{tpu_custom_call.1} parent=11 // pred_check_branch
          %133 = sbr.rel (%p131) target = $region20
        $region19: #{tpu_custom_call.1} parent=11 // pred_region
          %s135 = ssub.s32 16, 16
          %136 = vsyncadd [#allocation5], %s135
          %s138 = sshll.u32 %s1, 4
          %s139 = int_to_ptr.vmem [resolvable:$true] %s138
          %141 = dma.vmem_to_smem %s139, 16, [#allocation4], [#allocation5]
        $region20: #{tpu_custom_call.1} parent=11 // pred_fallthru
          _
      $region12: #{tpu_custom_call.1} parent=5 // pred_fallthru
        _
      %p142 = scmp.lt.s32.totalorder %s11, 2
      // Predicated region
      $region21: #{tpu_custom_call.1} parent=5 // pred_check
        %p143 = pneg %p142
      $region22: #{tpu_custom_call.1} parent=5 // pred_check_branch
        %145 = sbr.rel (%p143) target = $region24
      $region23: #{tpu_custom_call.1} parent=5 // pred_region
        // Predicated region
        $region25: #{tpu_custom_call.1} parent=23 // pred_check
          %p146 = pneg %p73
        $region26: #{tpu_custom_call.1} parent=23 // pred_check_branch
          %148 = sbr.rel (%p146) target = $region28
        $region27: #{tpu_custom_call.1} parent=23 // pred_region
          %p149 = scmp.lt.s32.totalorder %s11, 1
          %s150 = scalar_select %p149, %s11, 1
          %s151 = smul.addr %s150, 3
          %s152 = smul.addr %s151, 8
          %s153 = scalar_lea.vmem %s2, %s152
        $region28: #{tpu_custom_call.1} parent=23 // pred_fallthru
          _
      $region24: #{tpu_custom_call.1} parent=5 // pred_fallthru
        _
      %p154 = scmp.le.s32.totalorder 1, %s11
      %p155 = scmp.lt.s32.totalorder %s11, 3
      %p156 = pnand %p154, %p155
      %p157 = pneg %p156
      // Predicated region
      $region29: #{tpu_custom_call.1} parent=5 // pred_check
        _
      $region30: #{tpu_custom_call.1} parent=5 // pred_check_branch
        %159 = sbr.rel (%p156) target = $region32
      $region31: #{tpu_custom_call.1} parent=5 // pred_region
        %s160 = ssub.s32 %s11, 1
        // Predicated region
        $region33: #{tpu_custom_call.1} parent=31 // pred_check
          %p161 = pneg %p32
        $region34: #{tpu_custom_call.1} parent=31 // pred_check_branch
          %163 = sbr.rel (%p161) target = $region36
        $region35: #{tpu_custom_call.1} parent=31 // pred_region
          %164 = dma.done [#allocation3], 16
        $region36: #{tpu_custom_call.1} parent=31 // pred_fallthru
          _
        // Predicated region
        $region37: #{tpu_custom_call.1} parent=31 // pred_check
          %p165 = pneg %p53
        $region38: #{tpu_custom_call.1} parent=31 // pred_check_branch
          %167 = sbr.rel (%p165) target = $region40
        $region39: #{tpu_custom_call.1} parent=31 // pred_region
          %168 = dma.done [#allocation5], 16
        $region40: #{tpu_custom_call.1} parent=31 // pred_fallthru
          _
        %169 = sfence
        %p170 = pneg %p32
        %p171 = pneg %p29
        %p172 = pneg %p53
        %p173 = pneg %p50
        %p174 = scmp.lt.s32.totalorder %s16, 1
        %s175 = scalar_select %p174, %s16, 1
        %s176 = smul.addr %s175, 3
        %s177 = smul.addr %s176, 8
        %s178 = scalar_lea.vmem %s2, %s177
        %p179 = pneg %p79
        %p180 = pneg %p76
        %p181 = pneg %p105
        %p182 = pneg %p102
        %p183 = scmp.lt.s32.totalorder %s16, 1
        %s184 = scalar_select %p183, %s16, 1
        %s185 = smul.addr %s184, 3
        %s186 = smul.addr %s185, 8
        %s187 = scalar_lea.vmem %s3, %s186
        %p188 = scmp.lt.s32.totalorder %s16, 1
        %s189 = scalar_select %p188, %s16, 1
        %s190 = smul.addr %s189, 3
        %s191 = smul.addr %s190, 8
        %s192 = scalar_lea.vmem %s2, %s191
        %p193 = scmp.lt.s32.totalorder %s16, 1
        %s194 = scalar_select %p193, %s16, 1
        %s195 = smul.addr %s194, 3
        %s196 = smul.addr %s195, 8
        %s197 = scalar_lea.vmem %s3, %s196
        %v198 = vld [vmem:[%s192] sm:$0x3f]
        %s199 = scalar_lea.vmem %s192, 8
        %v200 = vld [vmem:[%s199] sm:$0x3f]
        %s201 = scalar_lea.vmem %s192, 16
        %v202 = vld [vmem:[%s201] sm:$0x3f]
        %s203 = sld [smem:[#allocation2]]
        %v204 = vstv %s203
        %v205 = vmul.f32 %v204, %v198
        %s206 = sld [smem:[#allocation2 + $0x1]]
        %v207 = vstv %s206
        %v208 = vmul.f32 %v207, %v200
        %v209 = vadd.f32 %v205, %v208
        %s210 = sld [smem:[#allocation2 + $0x2]]
        %v211 = vstv %s210
        %v212 = vmul.f32 %v211, %v202
        %v213 = vadd.f32 %v209, %v212
        %s214 = sld [smem:[#allocation4]]
        %v215 = vstv %s214
        %v216 = vadd.f32 %v213, %v215
        %v217 = vmax.f32 %v216, -0.5
        %s218 = smax.f32 %s214, -0.5
        %v219 = vmin.f32 %v217, 0.5
        %s220 = smin.f32 %s218, 0.5
        %v221 = vstv %s220
        %vm222 = vcmask 49152
        %223 = vst.msk [vmem:[%s197] sm:$0x1] %vm222, %v221
        %224 = vst.msk [vmem:[%s197 + $0x7] sm:$0x1] %vm222, %v221
        %vm225 = vcmask 5120
        %226 = vst.msk [vmem:[%s197 + $0x1] sm:$0x3f] %vm225, %v221
        %vm227 = vcmask 54320
        %228 = vst.msk [vmem:[%s197 + $0x1] sm:$0x3f] %vm227, %v221
        %230 = vrot.lane.b32.xlu0 %v219, 1
        %v231 = vpop.permute.xlu0 %230
        %vm233 = vcmask 46088
        %234 = vst.msk [vmem:[%s197 + $0x1] sm:$0x3f] %vm233, %v231
        %s235 = sld [smem:[#allocation2 + $0x3]]
        %v236 = vstv %s235
        %v237 = vmul.f32 %v236, %v198
        %s238 = sld [smem:[#allocation2 + $0x4]]
        %v239 = vstv %s238
        %v240 = vmul.f32 %v239, %v200
        %v241 = vadd.f32 %v237, %v240
        %s242 = sld [smem:[#allocation2 + $0x5]]
        %v243 = vstv %s242
        %v244 = vmul.f32 %v243, %v202
        %v245 = vadd.f32 %v241, %v244
        %s246 = sld [smem:[#allocation4 + $0x1]]
        %v247 = vstv %s246
        %v248 = vadd.f32 %v245, %v247
        %v249 = vmax.f32 %v248, -0.5
        %s250 = smax.f32 %s246, -0.5
        %v251 = vmin.f32 %v249, 0.5
        %s252 = smin.f32 %s250, 0.5
        %v253 = vstv %s252
        %s254 = scalar_lea.vmem %s197, 8
        %255 = vst.msk [vmem:[%s254] sm:$0x1] %vm222, %v253
        %256 = vst.msk [vmem:[%s254 + $0x7] sm:$0x1] %vm222, %v253
        %257 = vst.msk [vmem:[%s254 + $0x1] sm:$0x3f] %vm225, %v253
        %258 = vst.msk [vmem:[%s254 + $0x1] sm:$0x3f] %vm227, %v253
        %260 = vrot.lane.b32.xlu0 %v251, 1
        %v261 = vpop.permute.xlu0 %260
        %263 = vst.msk [vmem:[%s254 + $0x1] sm:$0x3f] %vm233, %v261
        %s264 = sld [smem:[#allocation2 + $0x6]]
        %v265 = vstv %s264
        %v266 = vmul.f32 %v265, %v198
        %s267 = sld [smem:[#allocation2 + $0x7]]
        %v268 = vstv %s267
        %v269 = vmul.f32 %v268, %v200
        %v270 = vadd.f32 %v266, %v269
        %s271 = sld [smem:[#allocation2 + $0x8]]
        %v272 = vstv %s271
        %v273 = vmul.f32 %v272, %v202
        %v274 = vadd.f32 %v270, %v273
        %s275 = sld [smem:[#allocation4 + $0x2]]
        %v276 = vstv %s275
        %v277 = vadd.f32 %v274, %v276
        %v278 = vmax.f32 %v277, -0.5
        %s279 = smax.f32 %s275, -0.5
        %v280 = vmin.f32 %v278, 0.5
        %s281 = smin.f32 %s279, 0.5
        %v282 = vstv %s281
        %s283 = scalar_lea.vmem %s197, 16
        %284 = vst.msk [vmem:[%s283] sm:$0x1] %vm222, %v282
        %285 = vst.msk [vmem:[%s283 + $0x7] sm:$0x1] %vm222, %v282
        %286 = vst.msk [vmem:[%s283 + $0x1] sm:$0x3f] %vm225, %v282
        %287 = vst.msk [vmem:[%s283 + $0x1] sm:$0x3f] %vm227, %v282
        %289 = vrot.lane.b32.xlu0 %v280, 1
        %v290 = vpop.permute.xlu0 %289
        %292 = vst.msk [vmem:[%s283 + $0x1] sm:$0x3f] %vm233, %v290
        %p293 = scmp.lt.s32.totalorder %s16, 1
        %s294 = scalar_select %p293, %s16, 1
        %s295 = smul.addr %s294, 3
        %s296 = smul.addr %s295, 8
        %s297 = scalar_lea.vmem %s3, %s296
        // Predicated region
        $region41: #{tpu_custom_call.1} parent=31 // pred_check
          %p298 = pneg %p102
        $region42: #{tpu_custom_call.1} parent=31 // pred_check_branch
          %300 = sbr.rel (%p298) target = $region44
        $region43: #{tpu_custom_call.1} parent=31 // pred_region
          _
        $region44: #{tpu_custom_call.1} parent=31 // pred_fallthru
          _
      $region32: #{tpu_custom_call.1} parent=5 // pred_fallthru
        _
      %p301 = scmp.le.s32.totalorder 2, %s11
      // Predicated region
      $region45: #{tpu_custom_call.1} parent=5 // pred_check
        %p302 = pneg %p301
      $region46: #{tpu_custom_call.1} parent=5 // pred_check_branch
        %304 = sbr.rel (%p302) target = $region48
      $region47: #{tpu_custom_call.1} parent=5 // pred_region
        %s305 = ssub.s32 %s11, 2
        // Predicated region
        $region49: #{tpu_custom_call.1} parent=47 // pred_check
          %p306 = pneg %p108
        $region50: #{tpu_custom_call.1} parent=47 // pred_check_branch
          %308 = sbr.rel (%p306) target = $region52
        $region51: #{tpu_custom_call.1} parent=47 // pred_region
          %p309 = scmp.lt.s32.totalorder %s17, 1
          %s310 = scalar_select %p309, %s17, 1
          %s311 = smul.addr %s310, 3
          %s312 = smul.addr %s311, 8
          %s313 = scalar_lea.vmem %s3, %s312
        $region52: #{tpu_custom_call.1} parent=47 // pred_fallthru
          _
      $region48: #{tpu_custom_call.1} parent=5 // pred_fallthru
        _
    $region6: #{tpu_custom_call.1} parent=1 // loop_footer
      %s15 = sadd.s32 1, %s11
    $region7: #{tpu_custom_call.1} parent=1 // loop_footer_branch
      %10 = sbr.rel target = $region3
    $region8: #{tpu_custom_call.1} parent=1 // loop_exit
      _
    %314 = vsyncpa [#allocation3], 1
    %s315 = scalar_lea.sflag [#allocation3], 1
    %316 = vsyncpa %s315, 1
    %317 = vsyncpa [#allocation5], 1

</llo_original>
